<compile_context>
chip_gen: v5e
topology: v5e:2x2
jax: 0.10.0
libtpu: 0.0.40
codegen_flags: <defaults>
</compile_context>

<pallas_src>
import functools

import jax
import jax.numpy as jnp
from jax.experimental import pallas as pl
from jax.experimental.pallas import tpu as pltpu

_LANE = 128
_SUBLANE = 8


def _round_down(v, m):
    return v // m * m


def _vmem_budget():
    try:
        return int(pltpu.get_tpu_info().vmem_capacity_bytes * 0.85)
    except Exception:
        return 54 * (1 << 20)  # conservative: fits v7x's 64 MiB per TensorCore


def _apply_activation(name, h):
    """Mosaic-safe activations matching str_to_activation."""
    if name == "relu":
        return jnp.maximum(h, 0.0)
    if name == "lrelu":
        return jnp.where(h > 0, h, 0.01 * h)
    if name == "gelu":
        # TODO(synk): torch nn.GELU default is the exact erf form; tanh
        # approximation used for a Mosaic-safe lowering.
        c = 0.7978845608028654  # sqrt(2/pi)
        return 0.5 * h * (1.0 + jnp.tanh(c * (h + 0.044715 * h * h * h)))
    if name == "elu":
        return jnp.where(h > 0, h, jnp.exp(h) - 1.0)
    if name == "swish":
        # exp + approx reciprocal both land on the EUP slot (free under MXU/DMA).
        return h * pl.reciprocal(1.0 + jnp.exp(-h), approx=True)
    raise ValueError(f"unknown activation: {name}")


def temb_block_kernel(activation, add_t_emb, concat_t_emb, *refs):
    """One (tile_b, tile_n) output tile.

    Ref order: x, [t_emb], Wx, [Wt], bias, out (bracketed only when used).
    Weights are stored (in, out), i.e. transposed vs torch.nn.Linear.weight.
    """
    use_t = concat_t_emb or add_t_emb
    it = iter(refs)
    x_ref = next(it)
    t_ref = next(it) if use_t else None
    wx_ref = next(it)
    wt_ref = next(it) if concat_t_emb else None
    b_ref = next(it)
    o_ref = next(it)

    size = x_ref.shape[-1]
    tn = o_ref.shape[-1]

    x = x_ref[...]  # full feature width: this is the matmul K dimension
    h = jnp.dot(x, wx_ref[...], preferred_element_type=jnp.float32)
    if concat_t_emb:
        h = h + jnp.dot(t_ref[...], wt_ref[...], preferred_element_type=jnp.float32)
    h = h + b_ref[...].astype(jnp.float32)
    h = _apply_activation(activation, h)

    # Residual: only the output-feature slice of x is needed when N-tiled.
    if tn == size:
        x_res = x
    else:
        col0 = pl.multiple_of(pl.program_id(1) * tn, tn)
        x_res = x_ref[:, pl.ds(col0, tn)]
    out = x_res.astype(jnp.float32) + h
    if add_t_emb:
        if tn == t_ref.shape[-1]:
            t_res = t_ref[...]
        else:
            col0 = pl.multiple_of(pl.program_id(1) * tn, tn)
            t_res = t_ref[:, pl.ds(col0, tn)]
        out = out + t_res.astype(jnp.float32)
    o_ref[...] = out.astype(o_ref.dtype)


def init_params(key, size, t_emb_size, concat_t_emb):
    """torch.nn.Linear-style uniform init; W stored (in, out)."""
    in_size = size + t_emb_size if concat_t_emb else size
    bound = 1.0 / float(in_size) ** 0.5
    kw, kb = jax.random.split(key)
    W = jax.random.uniform(kw, (in_size, size), jnp.float32, -bound, bound)
    b = jax.random.uniform(kb, (size,), jnp.float32, -bound, bound)
    return {"W": W, "b": b}


def prepare_params(params, size, concat_t_emb, dtype=jnp.float32):
    """One-time weight split/cast (call at init, not per forward)."""
    W = params["W"].astype(dtype)
    return {
        "Wx": W[:size],
        "Wt": W[size:] if concat_t_emb else None,
        "b": params["b"].astype(dtype).reshape(1, -1),
    }


def temb_block_forward(prepared, x, t_emb, *, activation="lrelu",
                       add_t_emb=False, concat_t_emb=False,
                       tile_b=1024, tile_n=None):
    """Equivalent of TembBlock.forward(x, t_emb). Output dtype == x.dtype."""
    orig_shape = x.shape
    size = x.shape[-1]
    t_size = t_emb.shape[-1]
    use_t = add_t_emb or concat_t_emb
    if add_t_emb and t_size != size:
        raise ValueError("add_t_emb requires t_emb feature size == size")

    x2 = x.reshape(-1, size)
    B = x2.shape[0]
    t2 = t_emb.reshape(-1, t_size) if use_t else None

    Wx, b = prepared["Wx"], prepared["b"]
    Wt = prepared["Wt"] if concat_t_emb else None
    if Wx.shape != (size, size):
        raise ValueError("prepared Wx has the wrong shape")

    out_dtype = x2.dtype
    act_itemsize = x2.dtype.itemsize
    w_itemsize = jnp.dtype(Wx.dtype).itemsize
    vmem_cap = _vmem_budget()

    # ---- output-feature (N) tiling: only when the resident weight is large.
    w_in = size + (t_size if concat_t_emb else 0)
    if tile_n is None:
        tile_n = size
        if size % _LANE == 0 and 2 * w_in * size * w_itemsize > vmem_cap // 4:
            cols = _round_down(max(_LANE, vmem_cap // 4 // (2 * w_in * w_itemsize)), _LANE)
            tile_n = max(_LANE, min(size, cols))
    if tile_n != size and (size % _LANE or tile_n % _LANE or size % tile_n):
        tile_n = size  # fall back to a single N block

    # ---- batch tiling: biggest tile that fits VMEM next to the weights.
    sub = _SUBLANE * max(1, 4 // act_itemsize)  # 8 rows for f32, 16 for bf16
    w_bytes = 2 * (w_in * tile_n + tile_n) * w_itemsize  # Pallas double-buffers
    per_row = 2 * (size * act_itemsize
                   + (t_size * t2.dtype.itemsize if use_t else 0)
                   + tile_n * jnp.dtype(out_dtype).itemsize)
    avail = vmem_cap - w_bytes - (2 << 20)
    tile_b_eff = min(tile_b, B)
    if avail > 0:
        tile_b_eff = min(tile_b_eff, max(sub, avail // per_row))
    if tile_b_eff < B:
        tile_b_eff = max(sub, _round_down(tile_b_eff, sub))
    else:
        tile_b_eff = B  # single block == full batch dim (always legal)

    grid = (pl.cdiv(B, tile_b_eff), pl.cdiv(size, tile_n))

    def act_map(i, j):
        return (i, 0)

    def w_map(i, j):
        return (0, j)

    def out_map(i, j):
        return (i, j)

    inputs = [x2]
    in_specs = [pl.BlockSpec((tile_b_eff, size), act_map)]
    if use_t:
        inputs.append(t2)
        in_specs.append(pl.BlockSpec((tile_b_eff, t_size), act_map))
    inputs.append(Wx)
    in_specs.append(pl.BlockSpec((size, tile_n), w_map))
    if concat_t_emb:
        inputs.append(Wt)
        in_specs.append(pl.BlockSpec((t_size, tile_n), w_map))
    inputs.append(b)
    in_specs.append(pl.BlockSpec((1, tile_n), w_map))
    out_specs = pl.BlockSpec((tile_b_eff, tile_n), out_map)

    need = tile_b_eff * per_row + w_bytes + tile_b_eff * tile_n * jnp.dtype(out_dtype).itemsize
    vmem_limit = int(min(vmem_cap, max(4 << 20, need + (2 << 20))))

    flops = 2 * B * size * w_in + 4 * B * size
    transc = B * size if activation in ("gelu", "elu", "swish") else 0
    w_reads = grid[0] if grid[1] > 1 else 1
    bytes_accessed = (x2.size * act_itemsize
                      + (t2.size * t2.dtype.itemsize if use_t else 0)
                      + w_reads * (Wx.size + (Wt.size if concat_t_emb else 0) + b.size) * w_itemsize
                      + B * size * jnp.dtype(out_dtype).itemsize)

    out2 = pl.pallas_call(
        functools.partial(temb_block_kernel, activation, add_t_emb, concat_t_emb),
        out_shape=jax.ShapeDtypeStruct((B, size), out_dtype),
        grid=grid,
        in_specs=in_specs,
        out_specs=out_specs,
        compiler_params=pltpu.CompilerParams(
            dimension_semantics=("parallel", "arbitrary"),
            vmem_limit_bytes=vmem_limit,
        ),
        cost_estimate=pl.CostEstimate(
            flops=int(flops),
            transcendentals=int(transc),
            bytes_accessed=int(bytes_accessed),
        ),
    )(*inputs)

    return out2.reshape(orig_shape)


def _reference_forward(params, x, t_emb, *, activation, add_t_emb, concat_t_emb):
    """Pure-JAX reference mirroring TembBlock.forward."""
    acts = {
        "relu": jax.nn.relu,
        "lrelu": lambda v: jnp.where(v > 0, v, 0.01 * v),
        "gelu": lambda v: jax.nn.gelu(v, approximate=True),
        "elu": lambda v: jnp.where(v > 0, v, jnp.exp(v) - 1.0),
        "swish": lambda v: v * jax.nn.sigmoid(v),
    }
    W, b = params["W"], params["b"]
    in_arg = jnp.concatenate([x, t_emb], axis=-1) if concat_t_emb else x
    h = acts[activation](in_arg @ W + b)
    out = x + h
    if add_t_emb:
        out = out + t_emb
    return out


if __name__ == "__main__":
    key = jax.random.PRNGKey(0)
    k = jax.random.split(key, 8)

    # Config 1: concat + residual t_emb add, LeakyReLU; small tile -> batch grid of 4.
    size, tsz, B = 32, 32, 32
    p1 = init_params(k[0], size, tsz, concat_t_emb=True)
    prep1 = prepare_params(p1, size, concat_t_emb=True)
    x1 = jax.random.normal(k[1], (B, size), jnp.float32)
    t1 = jax.random.normal(k[2], (B, tsz), jnp.float32)
    out1 = jax.block_until_ready(temb_block_forward(
        prep1, x1, t1, activation="lrelu", add_t_emb=True, concat_t_emb=True, tile_b=8))
    ref1 = _reference_forward(p1, x1, t1, activation="lrelu",
                              add_t_emb=True, concat_t_emb=True)
    assert out1.shape == x1.shape and out1.dtype == x1.dtype
    assert jnp.allclose(out1, ref1, rtol=1e-4, atol=1e-4), \
        float(jnp.max(jnp.abs(out1 - ref1)))

    # Config 2: plain residual block (no t_emb use), swish (EUP approx reciprocal,
    # hence the slightly relaxed tolerance).
    p2 = init_params(k[3], size, tsz, concat_t_emb=False)
    prep2 = prepare_params(p2, size, concat_t_emb=False)
    out2 = jax.block_until_ready(temb_block_forward(
        prep2, x1, t1, activation="swish", add_t_emb=False, concat_t_emb=False))
    ref2 = _reference_forward(p2, x1, t1, activation="swish",
                              add_t_emb=False, concat_t_emb=False)
    assert jnp.allclose(out2, ref2, rtol=2e-2, atol=2e-2), \
        float(jnp.max(jnp.abs(out2 - ref2)))

    # Config 3: N-tiled weights (tile_n < size) + ragged last batch block, ELU, concat only.
    size3, tsz3, B3 = 256, 128, 24
    p3 = init_params(k[4], size3, tsz3, concat_t_emb=True)
    prep3 = prepare_params(p3, size3, concat_t_emb=True)
    x3 = jax.random.normal(k[5], (B3, size3), jnp.float32)
    t3 = jax.random.normal(k[6], (B3, tsz3), jnp.float32)
    out3 = jax.block_until_ready(temb_block_forward(
        prep3, x3, t3, activation="elu", add_t_emb=False, concat_t_emb=True,
        tile_b=16, tile_n=128))
    ref3 = _reference_forward(p3, x3, t3, activation="elu",
                              add_t_emb=False, concat_t_emb=True)
    assert jnp.allclose(out3, ref3, rtol=1e-4, atol=1e-4), \
        float(jnp.max(jnp.abs(out3 - ref3)))

    # Config 4: bf16 end-to-end (inputs, weights, bf16 output) vs f32 reference.
    prep3_bf16 = prepare_params(p3, size3, concat_t_emb=True, dtype=jnp.bfloat16)
    out4 = jax.block_until_ready(temb_block_forward(
        prep3_bf16, x3.astype(jnp.bfloat16), t3.astype(jnp.bfloat16),
        activation="elu", add_t_emb=False, concat_t_emb=True))
    assert out4.dtype == jnp.bfloat16
    assert jnp.allclose(out4.astype(jnp.float32), ref3, rtol=5e-2, atol=5e-2), \
        float(jnp.max(jnp.abs(out4.astype(jnp.float32) - ref3)))

    print("KERNEL_OK")
</pallas_src>

<mosaic_0001>
module attributes {stable_mosaic.version = 11 : i64} {
  func.func @temb_block_kernel(%arg0: i32, %arg1: i32, %arg2: memref<8x32xf32, #tpu.memory_space<vmem>>, %arg3: memref<8x32xf32, #tpu.memory_space<vmem>>, %arg4: memref<32x32xf32, #tpu.memory_space<vmem>>, %arg5: memref<32x32xf32, #tpu.memory_space<vmem>>, %arg6: memref<1x32xf32, #tpu.memory_space<vmem>>, %arg7: memref<8x32xf32, #tpu.memory_space<vmem>>) attributes {dimension_semantics = [#tpu.dimension_semantics<parallel>, #tpu.dimension_semantics<arbitrary>], iteration_bounds = array<i64: 4, 1>, scalar_prefetch = 0 : i64, scratch_operands = 0 : i64, tpu.core_type = #tpu.core_type<tc>, window_params = [{transform_indices = @transform_0, window_bounds = array<i64: 8, 32>}, {transform_indices = @transform_1, window_bounds = array<i64: 8, 32>}, {transform_indices = @transform_2, window_bounds = array<i64: 32, 32>}, {transform_indices = @transform_3, window_bounds = array<i64: 32, 32>}, {transform_indices = @transform_4, window_bounds = array<i64: 1, 32>}, {transform_indices = @transform_5, window_bounds = array<i64: 8, 32>}]} {
    %c0 = arith.constant 0 : index
    %c0_0 = arith.constant 0 : index
    %0 = vector.load %arg2[%c0, %c0_0] : memref<8x32xf32, #tpu.memory_space<vmem>>, vector<8x32xf32>
    %c0_1 = arith.constant 0 : index
    %c0_2 = arith.constant 0 : index
    %1 = vector.load %arg4[%c0_1, %c0_2] : memref<32x32xf32, #tpu.memory_space<vmem>>, vector<32x32xf32>
    %cst = arith.constant dense<0.000000e+00> : vector<8x32xf32>
    %2 = tpu.matmul %0, %1, %cst {dimension_numbers = #tpu.dot_dimension_numbers<[1], [0], [0], [1], [0, 0, 1, 1], [], []>} : vector<8x32xf32>, vector<32x32xf32>, vector<8x32xf32> -> vector<8x32xf32>
    %c0_3 = arith.constant 0 : index
    %c0_4 = arith.constant 0 : index
    %3 = vector.load %arg3[%c0_3, %c0_4] : memref<8x32xf32, #tpu.memory_space<vmem>>, vector<8x32xf32>
    %c0_5 = arith.constant 0 : index
    %c0_6 = arith.constant 0 : index
    %4 = vector.load %arg5[%c0_5, %c0_6] : memref<32x32xf32, #tpu.memory_space<vmem>>, vector<32x32xf32>
    %cst_7 = arith.constant dense<0.000000e+00> : vector<8x32xf32>
    %5 = tpu.matmul %3, %4, %cst_7 {dimension_numbers = #tpu.dot_dimension_numbers<[1], [0], [0], [1], [0, 0, 1, 1], [], []>} : vector<8x32xf32>, vector<32x32xf32>, vector<8x32xf32> -> vector<8x32xf32>
    %6 = arith.addf %2, %5 : vector<8x32xf32>
    %c0_8 = arith.constant 0 : index
    %c0_9 = arith.constant 0 : index
    %7 = vector.load %arg6[%c0_8, %c0_9] : memref<1x32xf32, #tpu.memory_space<vmem>>, vector<1x32xf32>
    %8 = vector.broadcast %7 : vector<1x32xf32> to vector<8x32xf32>
    %9 = arith.addf %6, %8 : vector<8x32xf32>
    %cst_10 = arith.constant 0.000000e+00 : f32
    %10 = vector.broadcast %cst_10 : f32 to vector<8x32xf32>
    %11 = arith.cmpf ogt, %9, %10 : vector<8x32xf32>
    %cst_11 = arith.constant 0.00999999977 : f32
    %12 = vector.broadcast %cst_11 : f32 to vector<8x32xf32>
    %13 = arith.mulf %12, %9 : vector<8x32xf32>
    %14 = arith.select %11, %9, %13 : vector<8x32xi1>, vector<8x32xf32>
    %15 = arith.addf %0, %14 : vector<8x32xf32>
    %c0_12 = arith.constant 0 : index
    %c0_13 = arith.constant 0 : index
    %16 = vector.load %arg3[%c0_12, %c0_13] : memref<8x32xf32, #tpu.memory_space<vmem>>, vector<8x32xf32>
    %17 = arith.addf %15, %16 : vector<8x32xf32>
    %c0_14 = arith.constant 0 : index
    %c0_15 = arith.constant 0 : index
    %18 = vector.load %arg7[%c0_14, %c0_15] : memref<8x32xf32, #tpu.memory_space<vmem>>, vector<8x32xf32>
    tpu.vector_store %arg7[%c0_14, %c0_15], %17 {strides = array<i32>} : memref<8x32xf32, #tpu.memory_space<vmem>>, vector<8x32xf32>,
    return
  }
  func.func @transform_0(%arg0: i32, %arg1: i32) -> (i32, i32) {
    %c0_i32 = arith.constant 0 : i32
    %c0_i32_0 = arith.constant 0 : i32
    return %arg0, %c0_i32 : i32, i32
  }
  func.func @transform_1(%arg0: i32, %arg1: i32) -> (i32, i32) {
    %c0_i32 = arith.constant 0 : i32
    %c0_i32_0 = arith.constant 0 : i32
    return %arg0, %c0_i32 : i32, i32
  }
  func.func @transform_2(%arg0: i32, %arg1: i32) -> (i32, i32) {
    %c0_i32 = arith.constant 0 : i32
    %c0_i32_0 = arith.constant 0 : i32
    return %c0_i32, %arg1 : i32, i32
  }
  func.func @transform_3(%arg0: i32, %arg1: i32) -> (i32, i32) {
    %c0_i32 = arith.constant 0 : i32
    %c0_i32_0 = arith.constant 0 : i32
    return %c0_i32, %arg1 : i32, i32
  }
  func.func @transform_4(%arg0: i32, %arg1: i32) -> (i32, i32) {
    %c0_i32 = arith.constant 0 : i32
    %c0_i32_0 = arith.constant 0 : i32
    return %c0_i32, %arg1 : i32, i32
  }
  func.func @transform_5(%arg0: i32, %arg1: i32) -> (i32, i32) {
    %c0_i32 = arith.constant 0 : i32
    return %arg0, %arg1 : i32, i32
  }
}

</mosaic_0001>

<llo_original>
// kernel: tpu_custom_call.1
$region0: #{tpu_custom_call.1}
  #allocation0 [shape = 'u32[]', space=smem, size = 0x4, offset = 0x4, fixed_abs, tag = 'smem constant byte address 0x4 - core index']
  #allocation1 [shape = 'u32[72,128]{1,0:T(1,128)}', space=vmem, size = 0x9000, scoped, tag = 'internal scratch']
  %s0 = inlined_call_operand.hbm [shape: f32[32,32], index: 0, kind: input, shape index: {}]
  %s1 = inlined_call_operand.hbm [shape: f32[32,32], index: 1, kind: input, shape index: {}]
  %s2 = inlined_call_operand.hbm [shape: f32[32,32], index: 2, kind: input, shape index: {}]
  %s3 = inlined_call_operand.hbm [shape: f32[32,32], index: 3, kind: input, shape index: {}]
  %s4 = inlined_call_operand.vmem [shape: f32[1,32], index: 4, kind: input, shape index: {}]
  %s5 = inlined_call_operand.hbm [shape: f32[32,32], index: 5, kind: output, shape index: {}]
  %s6 = sld [smem:[#allocation0]]
  $region69: #{tpu_custom_call.1} parent=0
    _
  %s8 = ssub.s32 1, %s6
  %s9 = scalar_select 0, %s8, %s6
  $region1: #{tpu_custom_call.1} parent=0
    #allocation2 [shape = 'u8[8192]{0}', space=vmem, size = 0x2000, scoped, tag = 'input window, operand 0']
    #allocation3 [shape = 's32[2]{0}', space=sflag, size = 0x8, scoped, tag = 'scoped memory for tpu_custom_call.1']
    #allocation4 [shape = 's32[2]{0}', space=sflag, size = 0x8, scoped, tag = 'scoped memory for tpu_custom_call.1']
    #allocation5 [shape = 'u8[8192]{0}', space=vmem, size = 0x2000, scoped, tag = 'input window, operand 1']
    #allocation6 [shape = 's32[2]{0}', space=sflag, size = 0x8, scoped, tag = 'scoped memory for tpu_custom_call.1']
    #allocation7 [shape = 'u8[16384]{0}', space=vmem, size = 0x4000, scoped, tag = 'input window, operand 2, single buffered']
    #allocation8 [shape = 'u8[16384]{0}', space=vmem, size = 0x4000, scoped, tag = 'input window, operand 3, single buffered']
    #allocation9 [shape = 's32[1]{0}', space=sflag, size = 0x4, scoped, tag = 'scoped memory for tpu_custom_call.1']
    #allocation10 [shape = 'u8[8192]{0}', space=vmem, size = 0x2000, scoped, tag = 'output window, operand 0']
    %10 = vsyncpa [#allocation3], 0
    %s11 = scalar_lea.sflag [#allocation3], 1
    %12 = vsyncpa %s11, 0
    %13 = vsyncpa [#allocation6], 0
    %s14 = scalar_lea.sflag [#allocation6], 1
    %15 = vsyncpa %s14, 0
    %16 = vsyncpa [#allocation9], 0
    %17 = vsyncpa [#allocation4], 0
    %s18 = scalar_lea.sflag [#allocation4], 1
    %19 = vsyncpa %s18, 0
    loop: start=0, step=1, limit=6
    $region2: #{tpu_custom_call.1} parent=1 // loop_pre_header
      _
    $region3: #{tpu_custom_call.1} parent=1 // loop_header
      %s21 = sphi 0, %s25
      %p22 = scmp.ge.s32.totalorder %s21, 6
      %s28 = sphi 0, %s40
      %s29 = sphi 0, %s36
      %s30 = sphi 0, %s28
      %s31 = sphi 0, %s29
      %s32 = sphi 0, %s30
      %s33 = sphi 0, %s31
      %s43 = sphi 0, %s45
      %s46 = sphi 0, %s43
      %s47 = sphi 0, %s46
      %s63 = sphi 0, %s47
      %s69 = sphi 0, %s71
      %s72 = sphi 0, %s69
      %s73 = sphi 0, %s72
      %s89 = sphi 0, %s73
      %s95 = sphi 0, %s97
      %s98 = sphi 0, %s95
      %s99 = sphi 0, %s98
      %s115 = sphi 0, %s99
      %s121 = sphi 0, %s123
      %s124 = sphi 0, %s121
      %s125 = sphi 0, %s124
      %s141 = sphi 0, %s125
      %s147 = sphi 0, %s149
      %s150 = sphi 0, %s147
      %s151 = sphi 0, %s150
      %s167 = sphi 0, %s151
      %s175 = sphi 0, %s177
      %s178 = sphi 0, %s175
      %s179 = sphi 0, %s178
      %s195 = sphi 0, %s179
    $region4: #{tpu_custom_call.1} parent=1 // loop_header_branch
      %24 = sbr.rel (%p22) target = $region8
    $region5: #{tpu_custom_call.1} parent=1 // loop_body
      %s26 = ssub.s32 %s21, 1
      %s27 = ssub.s32 %s21, 2
      %s34 = sadd.s32 1, %s29
      %p35 = scmp.ge.s32.totalorder %s34, 1
      %s36 = scalar_select %p35, 0, %s34
      %s37 = sadd.s32 1, %s28
      %s38 = scalar_select %p35, %s37, %s28
      %p39 = scmp.ge.s32.totalorder %s38, 4
      %s40 = scalar_select %p39, 0, %s38
      %s41 = ssub.s32 %s28, %s40
      %p42 = scmp.eq.s32.totalorder %s41, 0
      %s44 = sadd.s32 %s43, 1
      %s45 = scalar_select %p42, %s43, %s44
      %p48 = pneg %p42
      %p49 = scmp.eq.s32.totalorder %s21, 3
      %p50 = por %p48, %p49
      %p51 = scmp.ne.s32.totalorder %s43, %s46
      %p52 = scmp.eq.s32.totalorder %s21, 0
      %p53 = por %p51, %p52
      %p54 = scmp.ne.s32.totalorder %s43, %s46
      %p55 = scmp.eq.s32.totalorder %s26, 3
      %p56 = por %p54, %p55
      %p57 = scmp.ne.s32.totalorder %s46, %s47
      %p58 = scmp.eq.s32.totalorder %s26, 0
      %p59 = por %p57, %p58
      %p60 = scmp.ne.s32.totalorder %s46, %s47
      %p61 = scmp.eq.s32.totalorder %s27, 3
      %p62 = por %p60, %p61
      %p64 = scmp.ne.s32.totalorder %s47, %s63
      %p65 = scmp.eq.s32.totalorder %s27, 0
      %p66 = por %p64, %p65
      %s67 = ssub.s32 %s28, %s40
      %p68 = scmp.eq.s32.totalorder %s67, 0
      %s70 = sadd.s32 %s69, 1
      %s71 = scalar_select %p68, %s69, %s70
      %p74 = pneg %p68
      %p75 = scmp.eq.s32.totalorder %s21, 3
      %p76 = por %p74, %p75
      %p77 = scmp.ne.s32.totalorder %s69, %s72
      %p78 = scmp.eq.s32.totalorder %s21, 0
      %p79 = por %p77, %p78
      %p80 = scmp.ne.s32.totalorder %s69, %s72
      %p81 = scmp.eq.s32.totalorder %s26, 3
      %p82 = por %p80, %p81
      %p83 = scmp.ne.s32.totalorder %s72, %s73
      %p84 = scmp.eq.s32.totalorder %s26, 0
      %p85 = por %p83, %p84
      %p86 = scmp.ne.s32.totalorder %s72, %s73
      %p87 = scmp.eq.s32.totalorder %s27, 3
      %p88 = por %p86, %p87
      %p90 = scmp.ne.s32.totalorder %s73, %s89
      %p91 = scmp.eq.s32.totalorder %s27, 0
      %p92 = por %p90, %p91
      %s93 = ssub.s32 %s29, %s36
      %p94 = scmp.eq.s32.totalorder %s93, 0
      %s96 = sadd.s32 %s95, 1
      %s97 = scalar_select %p94, %s95, %s96
      %p100 = pneg %p94
      %p101 = scmp.eq.s32.totalorder %s21, 3
      %p102 = por %p100, %p101
      %p103 = scmp.ne.s32.totalorder %s95, %s98
      %p104 = scmp.eq.s32.totalorder %s21, 0
      %p105 = por %p103, %p104
      %p106 = scmp.ne.s32.totalorder %s95, %s98
      %p107 = scmp.eq.s32.totalorder %s26, 3
      %p108 = por %p106, %p107
      %p109 = scmp.ne.s32.totalorder %s98, %s99
      %p110 = scmp.eq.s32.totalorder %s26, 0
      %p111 = por %p109, %p110
      %p112 = scmp.ne.s32.totalorder %s98, %s99
      %p113 = scmp.eq.s32.totalorder %s27, 3
      %p114 = por %p112, %p113
      %p116 = scmp.ne.s32.totalorder %s99, %s115
      %p117 = scmp.eq.s32.totalorder %s27, 0
      %p118 = por %p116, %p117
      %s119 = ssub.s32 %s29, %s36
      %p120 = scmp.eq.s32.totalorder %s119, 0
      %s122 = sadd.s32 %s121, 1
      %s123 = scalar_select %p120, %s121, %s122
      %p126 = pneg %p120
      %p127 = scmp.eq.s32.totalorder %s21, 3
      %p128 = por %p126, %p127
      %p129 = scmp.ne.s32.totalorder %s121, %s124
      %p130 = scmp.eq.s32.totalorder %s21, 0
      %p131 = por %p129, %p130
      %p132 = scmp.ne.s32.totalorder %s121, %s124
      %p133 = scmp.eq.s32.totalorder %s26, 3
      %p134 = por %p132, %p133
      %p135 = scmp.ne.s32.totalorder %s124, %s125
      %p136 = scmp.eq.s32.totalorder %s26, 0
      %p137 = por %p135, %p136
      %p138 = scmp.ne.s32.totalorder %s124, %s125
      %p139 = scmp.eq.s32.totalorder %s27, 3
      %p140 = por %p138, %p139
      %p142 = scmp.ne.s32.totalorder %s125, %s141
      %p143 = scmp.eq.s32.totalorder %s27, 0
      %p144 = por %p142, %p143
      %s145 = ssub.s32 %s29, %s36
      %p146 = scmp.eq.s32.totalorder %s145, 0
      %s148 = sadd.s32 %s147, 1
      %s149 = scalar_select %p146, %s147, %s148
      %p152 = pneg %p146
      %p153 = scmp.eq.s32.totalorder %s21, 3
      %p154 = por %p152, %p153
      %p155 = scmp.ne.s32.totalorder %s147, %s150
      %p156 = scmp.eq.s32.totalorder %s21, 0
      %p157 = por %p155, %p156
      %p158 = scmp.ne.s32.totalorder %s147, %s150
      %p159 = scmp.eq.s32.totalorder %s26, 3
      %p160 = por %p158, %p159
      %p161 = scmp.ne.s32.totalorder %s150, %s151
      %p162 = scmp.eq.s32.totalorder %s26, 0
      %p163 = por %p161, %p162
      %p164 = scmp.ne.s32.totalorder %s150, %s151
      %p165 = scmp.eq.s32.totalorder %s27, 3
      %p166 = por %p164, %p165
      %p168 = scmp.ne.s32.totalorder %s151, %s167
      %p169 = scmp.eq.s32.totalorder %s27, 0
      %p170 = por %p168, %p169
      %s171 = ssub.s32 %s28, %s40
      %s172 = ssub.s32 %s29, %s36
      %s173 = sor.u32 %s171, %s172
      %p174 = scmp.eq.s32.totalorder %s173, 0
      %s176 = sadd.s32 %s175, 1
      %s177 = scalar_select %p174, %s175, %s176
      %p180 = pneg %p174
      %p181 = scmp.eq.s32.totalorder %s21, 3
      %p182 = por %p180, %p181
      %p183 = scmp.ne.s32.totalorder %s175, %s178
      %p184 = scmp.eq.s32.totalorder %s21, 0
      %p185 = por %p183, %p184
      %p186 = scmp.ne.s32.totalorder %s175, %s178
      %p187 = scmp.eq.s32.totalorder %s26, 3
      %p188 = por %p186, %p187
      %p189 = scmp.ne.s32.totalorder %s178, %s179
      %p190 = scmp.eq.s32.totalorder %s26, 0
      %p191 = por %p189, %p190
      %p192 = scmp.ne.s32.totalorder %s178, %s179
      %p193 = scmp.eq.s32.totalorder %s27, 3
      %p194 = por %p192, %p193
      %p196 = scmp.ne.s32.totalorder %s179, %s195
      %p197 = scmp.eq.s32.totalorder %s27, 0
      %p198 = por %p196, %p197
      %p199 = scmp.le.s32.totalorder 1, %s21
      %p200 = scmp.lt.s32.totalorder %s21, 5
      %p201 = pnand %p199, %p200
      %p202 = pneg %p201
      // Predicated region
      $region9: #{tpu_custom_call.1} parent=5 // pred_check
        _
      $region10: #{tpu_custom_call.1} parent=5 // pred_check_branch
        %204 = sbr.rel (%p201) target = $region12
      $region11: #{tpu_custom_call.1} parent=5 // pred_region
        %s205 = ssub.s32 %s21, 1
        // Predicated region
        $region13: #{tpu_custom_call.1} parent=11 // pred_check
          %p206 = pneg %p111
        $region14: #{tpu_custom_call.1} parent=11 // pred_check_branch
          %208 = sbr.rel (%p206) target = $region16
        $region15: #{tpu_custom_call.1} parent=11 // pred_region
          %210 = vsyncadd [#allocation6], 0
          %s211 = smul.addr %s31, 8
          %s212 = scalar_lea.hbm %s2, %s211
          %s213 = sshll.u32 %s212, 4
          %s214 = int_to_ptr.hbm [resolvable:$true] %s213
          %s215 = sshll.u32 [#allocation7], 4
          %s216 = int_to_ptr.vmem [resolvable:$true] %s215
          %221 = dma.hbm_to_vmem [thread:$0]  %s214, 512, %s216, [#allocation6], 128, 128, 8
        $region16: #{tpu_custom_call.1} parent=11 // pred_fallthru
          _
        // Predicated region
        $region17: #{tpu_custom_call.1} parent=11 // pred_check
          %p222 = pneg %p137
        $region18: #{tpu_custom_call.1} parent=11 // pred_check_branch
          %224 = sbr.rel (%p222) target = $region20
        $region19: #{tpu_custom_call.1} parent=11 // pred_region
          %226 = vsyncadd [#allocation9], 0
          %s227 = smul.addr %s31, 8
          %s228 = scalar_lea.hbm %s3, %s227
          %s229 = sshll.u32 %s228, 4
          %s230 = int_to_ptr.hbm [resolvable:$true] %s229
          %s231 = sshll.u32 [#allocation8], 4
          %s232 = int_to_ptr.vmem [resolvable:$true] %s231
          %237 = dma.hbm_to_vmem [thread:$0]  %s230, 512, %s232, [#allocation9], 128, 128, 8
        $region20: #{tpu_custom_call.1} parent=11 // pred_fallthru
          _
        // Predicated region
        $region21: #{tpu_custom_call.1} parent=11 // pred_check
          %p238 = pneg %p163
        $region22: #{tpu_custom_call.1} parent=11 // pred_check_branch
          %240 = sbr.rel (%p238) target = $region24
        $region23: #{tpu_custom_call.1} parent=11 // pred_region
          %p241 = scmp.lt.s32.totalorder %s31, 0
          %s242 = scalar_select %p241, %s31, 0
          %s243 = scalar_lea.vmem %s4, %s242
        $region24: #{tpu_custom_call.1} parent=11 // pred_fallthru
          _
      $region12: #{tpu_custom_call.1} parent=5 // pred_fallthru
        _
      %p244 = scmp.lt.s32.totalorder %s21, 4
      // Predicated region
      $region25: #{tpu_custom_call.1} parent=5 // pred_check
        %p245 = pneg %p244
      $region26: #{tpu_custom_call.1} parent=5 // pred_check_branch
        %247 = sbr.rel (%p245) target = $region28
      $region27: #{tpu_custom_call.1} parent=5 // pred_region
        // Predicated region
        $region29: #{tpu_custom_call.1} parent=27 // pred_check
          %p248 = pneg %p53
        $region30: #{tpu_custom_call.1} parent=27 // pred_check_branch
          %250 = sbr.rel (%p248) target = $region32
        $region31: #{tpu_custom_call.1} parent=27 // pred_region
          %s251 = sand.u32 %s43, 1
          %s252 = scalar_lea.sflag [#allocation3], %s251
          %s253 = sand.u32 %s43, 1
          %s254 = smul.addr %s253, 8
          %s255 = scalar_lea.vmem [#allocation2], %s254
          %257 = vsyncadd %s252, 0
          %s258 = smul.addr %s28, 8
          %s259 = scalar_lea.hbm %s0, %s258
          %s261 = sshll.u32 %s259, 4
          %s262 = int_to_ptr.hbm [resolvable:$true] %s261
          %s263 = sshll.u32 %s255, 4
          %s264 = int_to_ptr.vmem [resolvable:$true] %s263
          %266 = dma.hbm_to_vmem [thread:$0]  %s262, 128, %s264, %s252
        $region32: #{tpu_custom_call.1} parent=27 // pred_fallthru
          _
        // Predicated region
        $region33: #{tpu_custom_call.1} parent=27 // pred_check
          %p267 = pneg %p79
        $region34: #{tpu_custom_call.1} parent=27 // pred_check_branch
          %269 = sbr.rel (%p267) target = $region36
        $region35: #{tpu_custom_call.1} parent=27 // pred_region
          %s270 = sand.u32 %s21, 1
          %s271 = scalar_lea.sflag [#allocation6], %s270
          %s272 = sand.u32 %s69, 1
          %s273 = smul.addr %s272, 8
          %s274 = scalar_lea.vmem [#allocation5], %s273
          %276 = vsyncadd %s271, 0
          %s277 = smul.addr %s28, 8
          %s278 = scalar_lea.hbm %s1, %s277
          %s280 = sshll.u32 %s278, 4
          %s281 = int_to_ptr.hbm [resolvable:$true] %s280
          %s282 = sshll.u32 %s274, 4
          %s283 = int_to_ptr.vmem [resolvable:$true] %s282
          %285 = dma.hbm_to_vmem [thread:$0]  %s281, 128, %s283, %s271
        $region36: #{tpu_custom_call.1} parent=27 // pred_fallthru
          _
      $region28: #{tpu_custom_call.1} parent=5 // pred_fallthru
        _
      %p286 = scmp.le.s32.totalorder 1, %s21
      %p287 = scmp.lt.s32.totalorder %s21, 5
      %p288 = pnand %p286, %p287
      %p289 = pneg %p288
      // Predicated region
      $region37: #{tpu_custom_call.1} parent=5 // pred_check
        _
      $region38: #{tpu_custom_call.1} parent=5 // pred_check_branch
        %291 = sbr.rel (%p288) target = $region40
      $region39: #{tpu_custom_call.1} parent=5 // pred_region
        %s292 = ssub.s32 %s21, 1
        %s293 = sand.u32 %s46, 1
        %s294 = scalar_lea.sflag [#allocation3], %s293
        %s295 = sand.u32 %s46, 1
        %s296 = smul.addr %s295, 8
        %s297 = scalar_lea.vmem [#allocation2], %s296
        // Predicated region
        $region41: #{tpu_custom_call.1} parent=39 // pred_check
          %p298 = pneg %p59
        $region42: #{tpu_custom_call.1} parent=39 // pred_check_branch
          %300 = sbr.rel (%p298) target = $region44
        $region43: #{tpu_custom_call.1} parent=39 // pred_region
          %302 = dma.done %s294, 128
        $region44: #{tpu_custom_call.1} parent=39 // pred_fallthru
          _
        %s303 = sand.u32 %s26, 1
        %s304 = scalar_lea.sflag [#allocation6], %s303
        %s305 = sand.u32 %s72, 1
        %s306 = smul.addr %s305, 8
        %s307 = scalar_lea.vmem [#allocation5], %s306
        // Predicated region
        $region45: #{tpu_custom_call.1} parent=39 // pred_check
          %p308 = pneg %p85
        $region46: #{tpu_custom_call.1} parent=39 // pred_check_branch
          %310 = sbr.rel (%p308) target = $region48
        $region47: #{tpu_custom_call.1} parent=39 // pred_region
          %312 = dma.done %s304, 128
        $region48: #{tpu_custom_call.1} parent=39 // pred_fallthru
          _
        // Predicated region
        $region49: #{tpu_custom_call.1} parent=39 // pred_check
          %p313 = pneg %p111
        $region50: #{tpu_custom_call.1} parent=39 // pred_check_branch
          %315 = sbr.rel (%p313) target = $region52
        $region51: #{tpu_custom_call.1} parent=39 // pred_region
          %317 = dma.done [#allocation6], 512
        $region52: #{tpu_custom_call.1} parent=39 // pred_fallthru
          _
        // Predicated region
        $region53: #{tpu_custom_call.1} parent=39 // pred_check
          %p318 = pneg %p137
        $region54: #{tpu_custom_call.1} parent=39 // pred_check_branch
          %320 = sbr.rel (%p318) target = $region56
        $region55: #{tpu_custom_call.1} parent=39 // pred_region
          %322 = dma.done [#allocation9], 512
        $region56: #{tpu_custom_call.1} parent=39 // pred_fallthru
          _
        %s323 = sand.u32 %s46, 1
        %s324 = scalar_lea.sflag [#allocation3], %s323
        %s325 = sand.u32 %s46, 1
        %s326 = smul.addr %s325, 8
        %s327 = scalar_lea.vmem [#allocation2], %s326
        %p328 = pneg %p59
        %p329 = pneg %p56
        %s330 = sand.u32 %s26, 1
        %s331 = scalar_lea.sflag [#allocation6], %s330
        %s332 = sand.u32 %s72, 1
        %s333 = smul.addr %s332, 8
        %s334 = scalar_lea.vmem [#allocation5], %s333
        %p335 = pneg %p85
        %p336 = pneg %p82
        %p337 = pneg %p111
        %p338 = pneg %p108
        %p339 = pneg %p137
        %p340 = pneg %p134
        %p341 = scmp.lt.s32.totalorder %s31, 0
        %s342 = scalar_select %p341, %s31, 0
        %s343 = scalar_lea.vmem %s4, %s342
        %p344 = pneg %p163
        %p345 = pneg %p160
        %p346 = pneg %p191
        %p347 = pneg %p188
        %s348 = sand.u32 %s178, 1
        %s349 = scalar_lea.sflag [#allocation4], %s348
        %s350 = sand.u32 %s178, 1
        %s351 = smul.addr %s350, 8
        %s352 = scalar_lea.vmem [#allocation10], %s351
        %p353 = scmp.lt.s32.totalorder %s31, 0
        %s354 = scalar_select %p353, %s31, 0
        %s355 = scalar_lea.vmem %s4, %s354
        %v356 = vld [vmem:[%s297] sm:$0xff]
        %v357 = vld [vmem:[#allocation7] sm:$0xff]
        %v358 = vld [vmem:[#allocation7 + $0x8] sm:$0xff]
        %v359 = vld [vmem:[#allocation7 + $0x10] sm:$0xff]
        %v360 = vld [vmem:[#allocation7 + $0x18] sm:$0xff]
        %v361 = vld [vmem:[%s307] sm:$0xff]
        %v362 = vld [vmem:[#allocation8] sm:$0xff]
        %v363 = vld [vmem:[#allocation8 + $0x8] sm:$0xff]
        %v364 = vld [vmem:[#allocation8 + $0x10] sm:$0xff]
        %v365 = vld [vmem:[#allocation8 + $0x18] sm:$0xff]
        %vm366 = vcmask 261120
        %v368 = vsel %vm366, %v361, 0
        %370 = vmatpush.msra.mxu0 0.0
        %371 = vmatpush.msra.mxu0 0.0
        %372 = vmatpush.msra.mxu0 0.0
        %373 = vmatpush.msra.mxu0 0.0
        %374 = vmatpush.msra.mxu0 0.0
        %375 = vmatpush.msra.mxu0 0.0
        %376 = vmatpush.msra.mxu0 0.0
        %377 = vmatpush.msra.mxu0 0.0
        %378 = vmatpush.msra.mxu0 0.0
        %379 = vmatpush.msra.mxu0 0.0
        %380 = vmatpush.msra.mxu0 0.0
        %381 = vmatpush.msra.mxu0 0.0
        %382 = vmatpush.msra.mxu0 %v365
        %383 = vmatpush.msra.mxu0 %v364
        %384 = vmatpush.msra.mxu0 %v363
        %385 = vmatpush.msra.mxu0 %v362
        %386 = vmatmul.f32.gmra.mxu0 %v368
        %v387 = vpop.f32.mrf.mxu0
        %v388 = vadd.f32 0.0, %v387
        %389 = vdwg.mxu0
        %v391 = vsel %vm366, %v356, 0
        %393 = vmatpush.msra.mxu0 0.0
        %394 = vmatpush.msra.mxu0 0.0
        %395 = vmatpush.msra.mxu0 0.0
        %396 = vmatpush.msra.mxu0 0.0
        %397 = vmatpush.msra.mxu0 0.0
        %398 = vmatpush.msra.mxu0 0.0
        %399 = vmatpush.msra.mxu0 0.0
        %400 = vmatpush.msra.mxu0 0.0
        %401 = vmatpush.msra.mxu0 0.0
        %402 = vmatpush.msra.mxu0 0.0
        %403 = vmatpush.msra.mxu0 0.0
        %404 = vmatpush.msra.mxu0 0.0
        %405 = vmatpush.msra.mxu0 %v360
        %406 = vmatpush.msra.mxu0 %v359
        %407 = vmatpush.msra.mxu0 %v358
        %408 = vmatpush.msra.mxu0 %v357
        %409 = vmatmul.f32.gmra.mxu0 %v391
        %v410 = vpop.f32.mrf.mxu0
        %v411 = vadd.f32 %v388, %v410
        %412 = vdwg.mxu0
        %v413 = vld [vmem:[%s355] sm:$0x1]
        %v415 = vperm.slane %v413, 0
        %v417 = vadd.f32 %v411, %v415
        %vm418 = vcmp.gt.f32.partialorder %v417, 0.0
        %v419 = vmul.f32 %v417, 0.01
        %v420 = vsel %vm418, %v417, %v419
        %v421 = vadd.f32 %v356, %v420
        %v422 = vadd.f32 %v421, %v361
        %423 = vst.msk [vmem:[%s352] sm:$0xff] %vm366, %v422
        %s424 = sand.u32 %s178, 1
        %s425 = scalar_lea.sflag [#allocation4], %s424
        %s426 = sand.u32 %s178, 1
        %s427 = smul.addr %s426, 8
        %s428 = scalar_lea.vmem [#allocation10], %s427
        // Predicated region
        $region57: #{tpu_custom_call.1} parent=39 // pred_check
          %p429 = pneg %p188
        $region58: #{tpu_custom_call.1} parent=39 // pred_check_branch
          %431 = sbr.rel (%p429) target = $region60
        $region59: #{tpu_custom_call.1} parent=39 // pred_region
          %433 = vsyncadd %s425, 0
          %s434 = sadd.s32 %s31, %s30
          %s435 = smul.addr %s434, 8
          %s436 = scalar_lea.hbm %s5, %s435
          %s438 = sshll.u32 %s428, 4
          %s439 = int_to_ptr.vmem [resolvable:$true] %s438
          %s440 = sshll.u32 %s436, 4
          %s441 = int_to_ptr.hbm [resolvable:$true] %s440
          %443 = dma.vmem_to_hbm [thread:$0]  %s439, 128, %s441, %s425
        $region60: #{tpu_custom_call.1} parent=39 // pred_fallthru
          _
      $region40: #{tpu_custom_call.1} parent=5 // pred_fallthru
        _
      %p444 = scmp.le.s32.totalorder 2, %s21
      // Predicated region
      $region61: #{tpu_custom_call.1} parent=5 // pred_check
        %p445 = pneg %p444
      $region62: #{tpu_custom_call.1} parent=5 // pred_check_branch
        %447 = sbr.rel (%p445) target = $region64
      $region63: #{tpu_custom_call.1} parent=5 // pred_region
        %s448 = ssub.s32 %s21, 2
        // Predicated region
        $region65: #{tpu_custom_call.1} parent=63 // pred_check
          %p449 = pneg %p194
        $region66: #{tpu_custom_call.1} parent=63 // pred_check_branch
          %451 = sbr.rel (%p449) target = $region68
        $region67: #{tpu_custom_call.1} parent=63 // pred_region
          %s452 = sand.u32 %s179, 1
          %s453 = scalar_lea.sflag [#allocation4], %s452
          %s454 = sand.u32 %s179, 1
          %s455 = smul.addr %s454, 8
          %s456 = scalar_lea.vmem [#allocation10], %s455
          %458 = dma.done %s453, 128
        $region68: #{tpu_custom_call.1} parent=63 // pred_fallthru
          _
      $region64: #{tpu_custom_call.1} parent=5 // pred_fallthru
        _
    $region6: #{tpu_custom_call.1} parent=1 // loop_footer
      %s25 = sadd.s32 1, %s21
    $region7: #{tpu_custom_call.1} parent=1 // loop_footer_branch
      %20 = sbr.rel target = $region3
    $region8: #{tpu_custom_call.1} parent=1 // loop_exit
      _
    %459 = vsyncpa [#allocation3], 1
    %s460 = scalar_lea.sflag [#allocation3], 1
    %461 = vsyncpa %s460, 1
    %462 = vsyncpa [#allocation6], 1
    %s463 = scalar_lea.sflag [#allocation6], 1
    %464 = vsyncpa %s463, 1
    %465 = vsyncpa [#allocation9], 1
    %466 = vsyncpa [#allocation4], 1
    %s467 = scalar_lea.sflag [#allocation4], 1
    %468 = vsyncpa %s467, 1

</llo_original>
